<compile_context>
chip_gen: v6e
topology: v6e:2x2x1
jax: 0.10.0
libtpu: 0.0.40
codegen_flags: <defaults>
</compile_context>

<pallas_src>
import functools

import jax
import jax.numpy as jnp
from jax import lax
from jax.experimental import pallas as pl
from jax.experimental.pallas import tpu as pltpu


# ----------------------------- helpers ------------------------------------ #

def _device_kind():
    try:
        return jax.devices()[0].device_kind.lower()
    except Exception:
        return ""


def _is_v7x():
    return "v7" in _device_kind()


def _default_num_core_splits():
    # v7x has 2 TensorCores per chip; v5e/v6e have 1 -> splitting buys nothing.
    return 2 if _is_v7x() else 1


def _row_tiling(n_rows, tm, splits):
    rows_per_core = -(-n_rows // splits)
    tm_eff = max(8, min(tm, -(-rows_per_core // 8) * 8))
    tiles_per_core = -(-rows_per_core // tm_eff)
    return tm_eff, tiles_per_core


def prepare_codebook(codebook, *, groups, num_vars, var_dim):
    """Augmented block-diagonal codebook RHS (build ONCE per parameter set).

    codebook: (groups*num_vars, var_dim) f32 (self.vars flattened; if
              combine_groups=True, repeat it across groups before calling).
    Returns (groups*num_vars, out_lanes) with out_lanes a multiple of 128:
      columns [0, groups*var_dim)   : block-diagonal codebook (quantized path)
      column  groups*var_dim + g    : codeword index v (as f32) for group g,
                                      so targets fall out of the same matmul.
    """
    GV = groups * num_vars
    Gvd = groups * var_dim
    out_lanes = ((Gvd + groups + 127) // 128) * 128
    cbr = jnp.asarray(codebook, jnp.float32).reshape(groups, num_vars, var_dim)
    cb = jnp.zeros((groups, num_vars, out_lanes), jnp.float32)
    idx = jnp.arange(num_vars, dtype=jnp.float32)
    for g in range(groups):
        cb = cb.at[g, :, g * var_dim:(g + 1) * var_dim].set(cbr[g])
        cb = cb.at[g, :, Gvd + g].set(idx)
    return cb.reshape(GV, out_lanes)


# ------------------------------ kernel ------------------------------------ #

def _gvq_kernel(x_ref, w_ref, b_ref, cb_ref, out_ref, acc_ref, *,
                groups, num_vars, tm, n_valid, tiles_per_core):
    c = pl.program_id(0)          # core-split axis
    i = pl.program_id(1)          # row-tile axis (accumulator lives across it)

    @pl.when(i == 0)
    def _():
        acc_ref[...] = jnp.zeros_like(acc_ref)

    # weight_proj: logits = x @ W + b   (bf16/f32 MXU matmul, f32 accumulate)
    logits = jnp.dot(x_ref[...], w_ref[...],
                     preferred_element_type=jnp.float32) + b_ref[...]

    # Row-validity weights laid out on LANES, so the row-direction statistics
    # reductions below run on the (otherwise idle) MXU instead of VPU/XLU.
    row0 = (c * tiles_per_core + i) * tm
    lane_rows = row0 + lax.broadcasted_iota(jnp.int32, (1, tm), 1)
    valid_row = (lane_rows < n_valid).astype(jnp.float32)            # (1, tm)

    iota_v = lax.broadcasted_iota(jnp.int32, (tm, num_vars), 1)      # hoisted

    onehot_cols, soft_cols = [], []
    for g in range(groups):          # static, small; 128-lane aligned slices
        lg = logits[:, g * num_vars:(g + 1) * num_vars]              # (tm, V)
        m = jnp.max(lg, axis=-1, keepdims=True)
        # first index achieving the max (matches torch argmax tie-break)
        first_idx = jnp.min(jnp.where(lg == m, iota_v, num_vars),
                            axis=-1, keepdims=True)
        onehot_cols.append((iota_v == first_idx).astype(jnp.float32))
        # softmax over codewords, float32 (as .float() in the reference)
        e = jnp.exp(lg - m)
        s = jnp.sum(e, axis=-1, keepdims=True)
        soft_cols.append(e * pl.reciprocal(s, approx=False))

    onehot_full = jnp.concatenate(onehot_cols, axis=1)               # (tm, G*V)

    # One lane-dense MXU matmul produces the quantized vectors AND the integer
    # targets (index columns of the augmented codebook); (tm, 128k) unmasked store.
    out_ref[...] = jnp.dot(onehot_full, cb_ref[...],
                           preferred_element_type=jnp.float32).astype(out_ref.dtype)

    # Row-direction hard/soft statistics as a single MXU matmul:
    # (1, tm) @ (tm, 2*G*V) -> (1, 2*G*V); valid mask = reduction weights.
    stats_rhs = jnp.concatenate([onehot_full] + soft_cols, axis=1)
    acc_ref[...] += jnp.dot(valid_row, stats_rhs,
                            preferred_element_type=jnp.float32)[None]


# ----------------------------- wrapper ------------------------------------ #

def gumbel_vq_forward(x, w, b, cb_mat, *, groups, num_vars, var_dim,
                      curr_temp, time_first=True, tm=2048,
                      num_core_splits=None, core_parallel=None,
                      proj_dtype=jnp.bfloat16):
    """Forward pass of GumbelVectorQuantizer (eval mode, produce_targets=True).

    x      : (B, T, D) if time_first else (B, D, T)
    w      : (D, groups*num_vars)   -- weight_proj weight (already transposed)
    b      : (groups*num_vars,)     -- weight_proj bias
    cb_mat : output of prepare_codebook() (hoisted out of the per-call path)
    """
    if not time_first:
        x = jnp.transpose(x, (0, 2, 1))
    B, T, D = x.shape
    N = B * T
    GV = groups * num_vars
    Gvd = groups * var_dim
    out_lanes = cb_mat.shape[1]
    assert cb_mat.shape[0] == GV and out_lanes % 128 == 0 and out_lanes >= Gvd + groups

    # ---- core split / tile sizing -----------------------------------------
    tm = max(8, (int(tm) // 8) * 8)
    if num_core_splits is None:
        num_core_splits = _default_num_core_splits()
        if num_core_splits > 1:
            _, tpc = _row_tiling(N, tm, num_core_splits)
            if tpc < 4:              # not enough work per core to pay for split
                num_core_splits = 1
    if core_parallel is None:
        core_parallel = (num_core_splits > 1) and _is_v7x()

    tm_eff, tiles_per_core = _row_tiling(N, tm, num_core_splits)
    n_pad = num_core_splits * tiles_per_core * tm_eff

    x2 = x.reshape(N, D)
    if n_pad > N:
        x2 = jnp.pad(x2, ((0, n_pad - N), (0, 0)))
    x2 = x2.astype(proj_dtype)                  # bf16 halves the x HBM read
    wp = w.astype(proj_dtype)
    bp = b.reshape(1, GV).astype(jnp.float32)

    # ---- VMEM budget (double-buffered blocks + resident intermediates) ----
    xb_bytes = jnp.dtype(proj_dtype).itemsize
    ob_bytes = jnp.dtype(x.dtype).itemsize
    buf = 2 * (tm_eff * D * xb_bytes + tm_eff * out_lanes * ob_bytes)
    invariant = 2 * (D * GV * xb_bytes + GV * 4 + GV * out_lanes * 4 + 2 * GV * 4)
    interm = tm_eff * GV * 4 * 6                # logits / one-hot / softmax / stats
    vmem_limit = int(min(48 << 20, max(32 << 20, buf + invariant + interm + (4 << 20))))

    kernel = functools.partial(_gvq_kernel, groups=groups, num_vars=num_vars,
                               tm=tm_eff, n_valid=N,
                               tiles_per_core=tiles_per_core)

    split_sem = pltpu.CORE_PARALLEL if core_parallel else pltpu.PARALLEL

    out_full, acc = pl.pallas_call(
        kernel,
        out_shape=(
            jax.ShapeDtypeStruct((n_pad, out_lanes), x.dtype),
            jax.ShapeDtypeStruct((num_core_splits, 1, 2 * GV), jnp.float32),
        ),
        grid_spec=pltpu.PrefetchScalarGridSpec(
            num_scalar_prefetch=0,
            grid=(num_core_splits, tiles_per_core),
            in_specs=[
                pl.BlockSpec((tm_eff, D),
                             lambda c, i: (c * tiles_per_core + i, 0)),   # x rows
                pl.BlockSpec((D, GV), lambda c, i: (0, 0)),               # proj weight
                pl.BlockSpec((1, GV), lambda c, i: (0, 0)),               # proj bias
                pl.BlockSpec((GV, out_lanes), lambda c, i: (0, 0)),       # aug. codebook
            ],
            out_specs=[
                pl.BlockSpec((tm_eff, out_lanes),
                             lambda c, i: (c * tiles_per_core + i, 0)),   # quant+targets
                pl.BlockSpec((1, 1, 2 * GV), lambda c, i: (c, 0, 0)),     # accumulator
            ],
        ),
        compiler_params=pltpu.CompilerParams(
            dimension_semantics=(split_sem, pltpu.ARBITRARY),
            vmem_limit_bytes=vmem_limit),
    )(x2, wp, bp, cb_mat)

    # ---- tiny scalar glue: combine split partials, then perplexities ------
    hard_probs = acc[:, 0, :GV].sum(axis=0).reshape(groups, num_vars) / N
    avg_probs = acc[:, 0, GV:].sum(axis=0).reshape(groups, num_vars) / N
    code_ppl = jnp.sum(jnp.exp(-jnp.sum(hard_probs * jnp.log(hard_probs + 1e-7),
                                        axis=-1)))
    prob_ppl = jnp.sum(jnp.exp(-jnp.sum(avg_probs * jnp.log(avg_probs + 1e-7),
                                        axis=-1)))

    xq = out_full[:N, :Gvd].reshape(B, T, Gvd)
    # Index columns are exact integers in f32 (and in bf16 for num_vars <= 256).
    tgt = out_full[:N, Gvd:Gvd + groups].astype(jnp.int32).reshape(B, T, groups)
    if not time_first:
        xq = jnp.transpose(xq, (0, 2, 1))
    return {
        "x": xq,
        "targets": tgt,
        "code_perplexity": code_ppl,
        "prob_perplexity": prob_ppl,
        "temp": curr_temp,
        "num_vars": num_vars * groups,
    }


# ---------------------------- reference ------------------------------------ #

def _reference_forward(x, w, b, cb, groups, num_vars, var_dim,
                       proj_dtype=jnp.float32):
    """Pure-JAX reference mirroring the PyTorch forward (eval mode)."""
    B, T, D = x.shape
    N = B * T
    logits = jnp.dot(x.reshape(N, D).astype(proj_dtype), w.astype(proj_dtype),
                     preferred_element_type=jnp.float32) + b
    lg = logits.reshape(N, groups, num_vars)
    k = jnp.argmax(lg, axis=-1)                            # (N, G)
    onehot = jax.nn.one_hot(k, num_vars, dtype=jnp.float32)
    hard_probs = onehot.mean(axis=0)
    code_ppl = jnp.sum(jnp.exp(-jnp.sum(hard_probs * jnp.log(hard_probs + 1e-7), -1)))
    avg = jax.nn.softmax(lg, axis=-1).mean(axis=0)
    prob_ppl = jnp.sum(jnp.exp(-jnp.sum(avg * jnp.log(avg + 1e-7), -1)))
    cbr = cb.reshape(groups, num_vars, var_dim)
    xq = jnp.einsum("ngv,gvd->ngd", onehot, cbr).reshape(B, T, groups * var_dim)
    return xq, k.reshape(B, T, groups).astype(jnp.int32), code_ppl, prob_ppl


# ------------------------------ tests -------------------------------------- #

if __name__ == "__main__":
    # Module config (consistent with the fairseq constructor):
    #   dim=32, num_vars=128, temp=(2.0, 0.5, 0.999), groups=2,
    #   combine_groups=False, vq_dim=64, time_first=True, weight_proj_depth=1
    num_vars, groups, vq_dim = 128, 2, 64
    var_dim = vq_dim // groups
    max_temp = 2.0
    D = 32

    key = jax.random.PRNGKey(0)
    kx, kw, kc, kx2 = jax.random.split(key, 4)

    # nn.Linear(dim, groups*num_vars): weight ~ N(0,1), bias = 0; stored
    # transposed as (D, G*V) so the kernel does x @ W.
    w = jax.random.normal(kw, (D, groups * num_vars), dtype=jnp.float32)
    b = jnp.zeros((groups * num_vars,), dtype=jnp.float32)
    # self.vars: (1, num_groups*num_vars, var_dim), uniform [0, 1); flattened.
    codebook = jax.random.uniform(kc, (groups * num_vars, var_dim),
                                  dtype=jnp.float32)

    # Augmented codebook built ONCE per parameter set (hoisted out of forward).
    cb_mat = prepare_codebook(codebook, groups=groups, num_vars=num_vars,
                              var_dim=var_dim)
    cb_mat = jax.block_until_ready(cb_mat)

    # ---- Case 1: tiny exact check (f32 projection, default tiling) ----
    B, T = 2, 8
    x = jax.random.normal(kx, (B, T, D), dtype=jnp.float32)
    res = gumbel_vq_forward(x, w, b, cb_mat, groups=groups, num_vars=num_vars,
                            var_dim=var_dim, curr_temp=max_temp,
                            proj_dtype=jnp.float32)
    jax.block_until_ready(res["x"])

    xq_ref, tgt_ref, cppl_ref, pppl_ref = _reference_forward(
        x, w, b, codebook, groups, num_vars, var_dim, proj_dtype=jnp.float32)
    assert jnp.allclose(res["x"], xq_ref, atol=1e-4, rtol=1e-4)
    assert jnp.array_equal(res["targets"], tgt_ref)
    assert jnp.allclose(res["code_perplexity"], cppl_ref, atol=1e-3, rtol=1e-3)
    assert jnp.allclose(res["prob_perplexity"], pppl_ref, atol=1e-3, rtol=1e-3)

    # ---- Case 2: padding/masking + multi-tile accumulation + explicit 2-way
    # split (plain "parallel" so it runs on any TPU generation) + bf16 proj ----
    B2, T2 = 2, 101                       # N=202 -> padded to 256 rows, masked
    xb = jax.random.normal(kx2, (B2, T2, D), dtype=jnp.float32)
    res2 = gumbel_vq_forward(xb, w, b, cb_mat, groups=groups, num_vars=num_vars,
                             var_dim=var_dim, curr_temp=max_temp, tm=64,
                             num_core_splits=2, core_parallel=False,
                             proj_dtype=jnp.bfloat16)
    jax.block_until_ready(res2["x"])

    xq_r2, tgt_r2, cppl_r2, pppl_r2 = _reference_forward(
        xb, w, b, codebook, groups, num_vars, var_dim, proj_dtype=jnp.bfloat16)
    # Allow rare argmax flips from matmul rounding differences (bf16 path).
    row_ok = (res2["targets"] == tgt_r2).all(-1)
    assert jnp.mean(row_ok.astype(jnp.float32)) >= 0.99
    assert jnp.allclose(jnp.where(row_ok[..., None], res2["x"] - xq_r2, 0.0),
                        0.0, atol=1e-5)
    assert jnp.allclose(res2["code_perplexity"], cppl_r2, atol=5e-2, rtol=5e-2)
    assert jnp.allclose(res2["prob_perplexity"], pppl_r2, atol=5e-2, rtol=5e-2)

    print("KERNEL_OK")
</pallas_src>

<mosaic_0001>
module attributes {stable_mosaic.version = 11 : i64} {
  func.func @_gvq_kernel(%arg0: i32, %arg1: i32, %arg2: memref<16x32xf32, #tpu.memory_space<vmem>>, %arg3: memref<32x256xf32, #tpu.memory_space<vmem>>, %arg4: memref<1x256xf32, #tpu.memory_space<vmem>>, %arg5: memref<256x128xf32, #tpu.memory_space<vmem>>, %arg6: memref<16x128xf32, #tpu.memory_space<vmem>>, %arg7: memref<1x1x512xf32, #tpu.memory_space<vmem>>) attributes {dimension_semantics = [#tpu.dimension_semantics<parallel>, #tpu.dimension_semantics<arbitrary>], iteration_bounds = array<i64: 1, 1>, scalar_prefetch = 0 : i64, scratch_operands = 0 : i64, tpu.core_type = #tpu.core_type<tc>, window_params = [{transform_indices = @transform_0, window_bounds = array<i64: 16, 32>}, {pipeline_mode = #tpu.pipeline_mode<synchronous>, transform_indices = @transform_1, window_bounds = array<i64: 32, 256>}, {pipeline_mode = #tpu.pipeline_mode<synchronous>, transform_indices = @transform_2, window_bounds = array<i64: 1, 256>}, {pipeline_mode = #tpu.pipeline_mode<synchronous>, transform_indices = @transform_3, window_bounds = array<i64: 256, 128>}, {transform_indices = @transform_4, window_bounds = array<i64: 16, 128>}, {transform_indices = @transform_5, window_bounds = array<i64: 1, 1, 512>}]} {
    %c0_i32 = arith.constant 0 : i32
    %0 = arith.cmpi eq, %arg1, %c0_i32 : i32
    %1 = arith.extui %0 : i1 to i32
    %c0_i32_0 = arith.constant 0 : i32
    %2 = arith.cmpi ne, %1, %c0_i32_0 : i32
    scf.if %2 {
      %cst_26 = arith.constant 0.000000e+00 : f32
      %72 = vector.broadcast %cst_26 : f32 to vector<1x1x512xf32>
      %c0_27 = arith.constant 0 : index
      %c0_28 = arith.constant 0 : index
      %c0_29 = arith.constant 0 : index
      %73 = vector.load %arg7[%c0_27, %c0_28, %c0_29] : memref<1x1x512xf32, #tpu.memory_space<vmem>>, vector<1x1x512xf32>
      tpu.vector_store %arg7[%c0_27, %c0_28, %c0_29], %72 {strides = array<i32>} : memref<1x1x512xf32, #tpu.memory_space<vmem>>, vector<1x1x512xf32>,
    } else {
    }
    %c0 = arith.constant 0 : index
    %c0_1 = arith.constant 0 : index
    %3 = vector.load %arg2[%c0, %c0_1] : memref<16x32xf32, #tpu.memory_space<vmem>>, vector<16x32xf32>
    %c0_2 = arith.constant 0 : index
    %c0_3 = arith.constant 0 : index
    %4 = vector.load %arg3[%c0_2, %c0_3] : memref<32x256xf32, #tpu.memory_space<vmem>>, vector<32x256xf32>
    %cst = arith.constant dense<0.000000e+00> : vector<16x256xf32>
    %5 = tpu.matmul %3, %4, %cst {dimension_numbers = #tpu.dot_dimension_numbers<[1], [0], [0], [1], [0, 0, 1, 1], [], []>} : vector<16x32xf32>, vector<32x256xf32>, vector<16x256xf32> -> vector<16x256xf32>
    %c0_4 = arith.constant 0 : index
    %c0_5 = arith.constant 0 : index
    %6 = vector.load %arg4[%c0_4, %c0_5] : memref<1x256xf32, #tpu.memory_space<vmem>>, vector<1x256xf32>
    %7 = vector.broadcast %6 : vector<1x256xf32> to vector<16x256xf32>
    %8 = arith.addf %5, %7 : vector<16x256xf32>
    %c1_i32 = arith.constant 1 : i32
    %9 = arith.muli %arg0, %c1_i32 : i32
    %10 = arith.addi %9, %arg1 : i32
    %c16_i32 = arith.constant 16 : i32
    %11 = arith.muli %10, %c16_i32 : i32
    %12 = tpu.iota {dimensions = array<i32: 1>} : vector<1x16xi32>
    %13 = vector.broadcast %11 : i32 to vector<1x16xi32>
    %14 = arith.addi %13, %12 : vector<1x16xi32>
    %c16_i32_6 = arith.constant 16 : i32
    %15 = vector.broadcast %c16_i32_6 : i32 to vector<1x16xi32>
    %16 = arith.cmpi slt, %14, %15 : vector<1x16xi32>
    %17 = arith.extui %16 : vector<1x16xi1> to vector<1x16xi32>
    %18 = arith.sitofp %17 : vector<1x16xi32> to vector<1x16xf32>
    %19 = tpu.iota {dimensions = array<i32: 1>} : vector<16x128xi32>
    %20 = vector.extract_strided_slice %8 {offsets = [0, 0], sizes = [16, 128], strides = [1, 1]} : vector<16x256xf32> to vector<16x128xf32>
    %cst_7 = arith.constant dense<0xFF800000> : vector<16xf32>
    %21 = vector.multi_reduction <maximumf>, %20, %cst_7 [1] : vector<16x128xf32> to vector<16xf32>
    %22 = vector.shape_cast %21 : vector<16xf32> to vector<16x1xf32>
    %23 = vector.broadcast %22 : vector<16x1xf32> to vector<16x128xf32>
    %24 = arith.cmpf oeq, %20, %23 : vector<16x128xf32>
    %c128_i32 = arith.constant 128 : i32
    %25 = vector.broadcast %c128_i32 : i32 to vector<16x128xi32>
    %26 = arith.select %24, %19, %25 : vector<16x128xi1>, vector<16x128xi32>
    %cst_8 = arith.constant dense<2147483647> : vector<16xi32>
    %27 = vector.multi_reduction <minsi>, %26, %cst_8 [1] : vector<16x128xi32> to vector<16xi32>
    %28 = vector.shape_cast %27 : vector<16xi32> to vector<16x1xi32>
    %29 = vector.broadcast %28 : vector<16x1xi32> to vector<16x128xi32>
    %30 = arith.cmpi eq, %19, %29 : vector<16x128xi32>
    %31 = arith.extui %30 : vector<16x128xi1> to vector<16x128xi32>
    %32 = arith.sitofp %31 : vector<16x128xi32> to vector<16x128xf32>
    %33 = vector.broadcast %22 : vector<16x1xf32> to vector<16x128xf32>
    %34 = arith.subf %20, %33 : vector<16x128xf32>
    %35 = math.exp %34 : vector<16x128xf32>
    %cst_9 = arith.constant dense<0.000000e+00> : vector<16xf32>
    %36 = vector.multi_reduction <add>, %35, %cst_9 [1] : vector<16x128xf32> to vector<16xf32>
    %37 = vector.shape_cast %36 : vector<16xf32> to vector<16x1xf32>
    %38 = tpu.reciprocal %37 : vector<16x1xf32> -> vector<16x1xf32>
    %39 = vector.broadcast %38 : vector<16x1xf32> to vector<16x128xf32>
    %40 = arith.mulf %35, %39 : vector<16x128xf32>
    %41 = vector.extract_strided_slice %8 {offsets = [0, 128], sizes = [16, 128], strides = [1, 1]} : vector<16x256xf32> to vector<16x128xf32>
    %cst_10 = arith.constant dense<0xFF800000> : vector<16xf32>
    %42 = vector.multi_reduction <maximumf>, %41, %cst_10 [1] : vector<16x128xf32> to vector<16xf32>
    %43 = vector.shape_cast %42 : vector<16xf32> to vector<16x1xf32>
    %44 = vector.broadcast %43 : vector<16x1xf32> to vector<16x128xf32>
    %45 = arith.cmpf oeq, %41, %44 : vector<16x128xf32>
    %c128_i32_11 = arith.constant 128 : i32
    %46 = vector.broadcast %c128_i32_11 : i32 to vector<16x128xi32>
    %47 = arith.select %45, %19, %46 : vector<16x128xi1>, vector<16x128xi32>
    %cst_12 = arith.constant dense<2147483647> : vector<16xi32>
    %48 = vector.multi_reduction <minsi>, %47, %cst_12 [1] : vector<16x128xi32> to vector<16xi32>
    %49 = vector.shape_cast %48 : vector<16xi32> to vector<16x1xi32>
    %50 = vector.broadcast %49 : vector<16x1xi32> to vector<16x128xi32>
    %51 = arith.cmpi eq, %19, %50 : vector<16x128xi32>
    %52 = arith.extui %51 : vector<16x128xi1> to vector<16x128xi32>
    %53 = arith.sitofp %52 : vector<16x128xi32> to vector<16x128xf32>
    %54 = vector.broadcast %43 : vector<16x1xf32> to vector<16x128xf32>
    %55 = arith.subf %41, %54 : vector<16x128xf32>
    %56 = math.exp %55 : vector<16x128xf32>
    %cst_13 = arith.constant dense<0.000000e+00> : vector<16xf32>
    %57 = vector.multi_reduction <add>, %56, %cst_13 [1] : vector<16x128xf32> to vector<16xf32>
    %58 = vector.shape_cast %57 : vector<16xf32> to vector<16x1xf32>
    %59 = tpu.reciprocal %58 : vector<16x1xf32> -> vector<16x1xf32>
    %60 = vector.broadcast %59 : vector<16x1xf32> to vector<16x128xf32>
    %61 = arith.mulf %56, %60 : vector<16x128xf32>
    %62 = tpu.concatenate %32, %53 in 1 : vector<16x128xf32>, vector<16x128xf32> -> vector<16x256xf32>
    %c0_14 = arith.constant 0 : index
    %c0_15 = arith.constant 0 : index
    %63 = vector.load %arg5[%c0_14, %c0_15] : memref<256x128xf32, #tpu.memory_space<vmem>>, vector<256x128xf32>
    %cst_16 = arith.constant dense<0.000000e+00> : vector<16x128xf32>
    %64 = tpu.matmul %62, %63, %cst_16 {dimension_numbers = #tpu.dot_dimension_numbers<[1], [0], [0], [1], [0, 0, 1, 1], [], []>} : vector<16x256xf32>, vector<256x128xf32>, vector<16x128xf32> -> vector<16x128xf32>
    %c0_17 = arith.constant 0 : index
    %c0_18 = arith.constant 0 : index
    %65 = vector.load %arg6[%c0_17, %c0_18] : memref<16x128xf32, #tpu.memory_space<vmem>>, vector<16x128xf32>
    tpu.vector_store %arg6[%c0_17, %c0_18], %64 {strides = array<i32>} : memref<16x128xf32, #tpu.memory_space<vmem>>, vector<16x128xf32>,
    %66 = tpu.concatenate %62, %40, %61 in 1 : vector<16x256xf32>, vector<16x128xf32>, vector<16x128xf32> -> vector<16x512xf32>
    %c0_19 = arith.constant 0 : index
    %c0_20 = arith.constant 0 : index
    %c0_21 = arith.constant 0 : index
    %67 = vector.load %arg7[%c0_19, %c0_20, %c0_21] : memref<1x1x512xf32, #tpu.memory_space<vmem>>, vector<1x1x512xf32>
    %cst_22 = arith.constant dense<0.000000e+00> : vector<1x512xf32>
    %68 = tpu.matmul %18, %66, %cst_22 {dimension_numbers = #tpu.dot_dimension_numbers<[1], [0], [0], [1], [0, 0, 1, 1], [], []>} : vector<1x16xf32>, vector<16x512xf32>, vector<1x512xf32> -> vector<1x512xf32>
    %69 = vector.shape_cast %68 : vector<1x512xf32> to vector<1x1x512xf32>
    %70 = arith.addf %67, %69 : vector<1x1x512xf32>
    %c0_23 = arith.constant 0 : index
    %c0_24 = arith.constant 0 : index
    %c0_25 = arith.constant 0 : index
    %71 = vector.load %arg7[%c0_23, %c0_24, %c0_25] : memref<1x1x512xf32, #tpu.memory_space<vmem>>, vector<1x1x512xf32>
    tpu.vector_store %arg7[%c0_23, %c0_24, %c0_25], %70 {strides = array<i32>} : memref<1x1x512xf32, #tpu.memory_space<vmem>>, vector<1x1x512xf32>,
    return
  }
  func.func @transform_0(%arg0: i32, %arg1: i32) -> (i32, i32) {
    %c1_i32 = arith.constant 1 : i32
    %0 = arith.muli %arg0, %c1_i32 : i32
    %1 = arith.addi %0, %arg1 : i32
    %c0_i32 = arith.constant 0 : i32
    %c0_i32_0 = arith.constant 0 : i32
    return %1, %c0_i32 : i32, i32
  }
  func.func @transform_1(%arg0: i32, %arg1: i32) -> (i32, i32) {
    %c0_i32 = arith.constant 0 : i32
    %c0_i32_0 = arith.constant 0 : i32
    %c0_i32_1 = arith.constant 0 : i32
    return %c0_i32, %c0_i32_0 : i32, i32
  }
  func.func @transform_2(%arg0: i32, %arg1: i32) -> (i32, i32) {
    %c0_i32 = arith.constant 0 : i32
    %c0_i32_0 = arith.constant 0 : i32
    %c0_i32_1 = arith.constant 0 : i32
    return %c0_i32, %c0_i32_0 : i32, i32
  }
  func.func @transform_3(%arg0: i32, %arg1: i32) -> (i32, i32) {
    %c0_i32 = arith.constant 0 : i32
    %c0_i32_0 = arith.constant 0 : i32
    %c0_i32_1 = arith.constant 0 : i32
    return %c0_i32, %c0_i32_0 : i32, i32
  }
  func.func @transform_4(%arg0: i32, %arg1: i32) -> (i32, i32) {
    %c1_i32 = arith.constant 1 : i32
    %0 = arith.muli %arg0, %c1_i32 : i32
    %1 = arith.addi %0, %arg1 : i32
    %c0_i32 = arith.constant 0 : i32
    %c0_i32_0 = arith.constant 0 : i32
    return %1, %c0_i32 : i32, i32
  }
  func.func @transform_5(%arg0: i32, %arg1: i32) -> (i32, i32, i32) {
    %c0_i32 = arith.constant 0 : i32
    %c0_i32_0 = arith.constant 0 : i32
    %c0_i32_1 = arith.constant 0 : i32
    return %arg0, %c0_i32, %c0_i32_0 : i32, i32, i32
  }
}

</mosaic_0001>

<llo_original>
// kernel: tpu_custom_call.1
$region0: #{tpu_custom_call.1}
  #allocation0 [shape = 'u32[]', space=smem, size = 0x4, offset = 0x4, fixed_abs, tag = 'smem constant byte address 0x4 - core index']
  #allocation1 [shape = 'u32[144,128]{1,0:T(1,128)}', space=vmem, size = 0x12000, scoped, tag = 'internal scratch']
  %s0 = inlined_call_operand.hbm [shape: f32[16,32], index: 0, kind: input, shape index: {}]
  %s1 = inlined_call_operand.hbm [shape: f32[32,256], index: 1, kind: input, shape index: {}]
  %s2 = inlined_call_operand.vmem [shape: f32[1,256], index: 2, kind: input, shape index: {}]
  %s3 = inlined_call_operand.hbm [shape: f32[256,128], index: 3, kind: input, shape index: {}]
  %s4 = inlined_call_operand.hbm [shape: f32[16,128], index: 4, kind: output, shape index: {0}]
  %s5 = inlined_call_operand.hbm [shape: f32[1,1,512], index: 5, kind: output, shape index: {1}]
  %6 = xla_tuple %s4, %s5
  %s7 = sld [smem:[#allocation0]]
  $region50: #{tpu_custom_call.1} parent=0
    _
  %s9 = ssub.s32 1, %s7
  %s10 = scalar_select 0, %s9, %s7
  $region1: #{tpu_custom_call.1} parent=0
    #allocation2 [shape = 'u8[8192]{0}', space=vmem, size = 0x2000, scoped, tag = 'input window, operand 0, single buffered']
    #allocation3 [shape = 's32[1]{0}', space=sflag, size = 0x4, scoped, tag = 'scoped memory for tpu_custom_call.1']
    #allocation4 [shape = 's32[1]{0}', space=sflag, size = 0x4, scoped, tag = 'scoped memory for tpu_custom_call.1']
    #allocation5 [shape = 'u8[32768]{0}', space=vmem, size = 0x8000, scoped, tag = 'input window, operand 1, single buffered']
    #allocation6 [shape = 's32[1]{0}', space=sflag, size = 0x4, scoped, tag = 'scoped memory for tpu_custom_call.1']
    #allocation7 [shape = 'u8[131072]{0}', space=vmem, size = 0x20000, scoped, tag = 'input window, operand 3, single buffered']
    #allocation8 [shape = 'u8[8192]{0}', space=vmem, size = 0x2000, scoped, tag = 'output window, operand 0, single buffered']
    #allocation9 [shape = 'u8[2048]{0}', space=vmem, size = 0x800, scoped, tag = 'output window, operand 1, single buffered']
    #allocation10 [shape = 's32[1]{0}', space=sflag, size = 0x4, scoped, tag = 'scoped memory for tpu_custom_call.1']
    %11 = vsyncpa [#allocation3], 0
    %12 = vsyncpa [#allocation6], 0
    %13 = vsyncpa [#allocation4], 0
    %14 = vsyncpa [#allocation10], 0
    // Predicated region
    $region2: #{tpu_custom_call.1} parent=1 // pred_check
      _
    $region3: #{tpu_custom_call.1} parent=1 // pred_check_branch
      %16 = sbr.rel (0) target = $region5
    $region4: #{tpu_custom_call.1} parent=1 // pred_region
      %s17 = sadd.s32 0, 0
      %s18 = smul.u32 2, %s17
      %s20 = ssub.s32 256, 256
      %21 = vsyncadd [#allocation3], %s20
      %s22 = smul.addr %s18, 128
      %s23 = scalar_lea.hbm %s0, %s22
      %s24 = sshll.u32 [#allocation2], 4
      %s25 = int_to_ptr.vmem [resolvable:$true] %s24
      %30 = dma.hbm_to_vmem [thread:$0]  %s23, 256, %s25, [#allocation3], 128, 128, 8
    $region5: #{tpu_custom_call.1} parent=1 // pred_fallthru
      _
    // Predicated region
    $region6: #{tpu_custom_call.1} parent=1 // pred_check
      _
    $region7: #{tpu_custom_call.1} parent=1 // pred_check_branch
      %32 = sbr.rel (0) target = $region9
    $region8: #{tpu_custom_call.1} parent=1 // pred_region
      %s34 = ssub.s32 1024, 1024
      %35 = vsyncadd [#allocation6], %s34
      %s36 = sshll.u32 [#allocation5], 4
      %s37 = int_to_ptr.vmem [resolvable:$true] %s36
      %42 = dma.hbm_to_vmem [thread:$0]  %s1, 1024, %s37, [#allocation6], 256, 256, 16
    $region9: #{tpu_custom_call.1} parent=1 // pred_fallthru
      _
    // Predicated region
    $region10: #{tpu_custom_call.1} parent=1 // pred_check
      _
    $region11: #{tpu_custom_call.1} parent=1 // pred_check_branch
      %44 = sbr.rel (0) target = $region13
    $region12: #{tpu_custom_call.1} parent=1 // pred_region
      _
    $region13: #{tpu_custom_call.1} parent=1 // pred_fallthru
      _
    // Predicated region
    $region14: #{tpu_custom_call.1} parent=1 // pred_check
      _
    $region15: #{tpu_custom_call.1} parent=1 // pred_check_branch
      %46 = sbr.rel (0) target = $region17
    $region16: #{tpu_custom_call.1} parent=1 // pred_region
      %s48 = ssub.s32 4096, 4096
      %49 = vsyncadd [#allocation6], %s48
      %s50 = sshll.u32 [#allocation7], 4
      %s51 = int_to_ptr.vmem [resolvable:$true] %s50
      %56 = dma.hbm_to_vmem [thread:$0]  %s3, 4096, %s51, [#allocation6], 128, 128, 8
    $region17: #{tpu_custom_call.1} parent=1 // pred_fallthru
      _
    // Predicated region
    $region18: #{tpu_custom_call.1} parent=1 // pred_check
      _
    $region19: #{tpu_custom_call.1} parent=1 // pred_check_branch
      %58 = sbr.rel (0) target = $region21
    $region20: #{tpu_custom_call.1} parent=1 // pred_region
      %59 = dma.done [#allocation3], 256
    $region21: #{tpu_custom_call.1} parent=1 // pred_fallthru
      _
    // Predicated region
    $region22: #{tpu_custom_call.1} parent=1 // pred_check
      _
    $region23: #{tpu_custom_call.1} parent=1 // pred_check_branch
      %61 = sbr.rel (0) target = $region25
    $region24: #{tpu_custom_call.1} parent=1 // pred_region
      %62 = dma.done [#allocation6], 1024
    $region25: #{tpu_custom_call.1} parent=1 // pred_fallthru
      _
    // Predicated region
    $region26: #{tpu_custom_call.1} parent=1 // pred_check
      _
    $region27: #{tpu_custom_call.1} parent=1 // pred_check_branch
      %64 = sbr.rel (0) target = $region29
    $region28: #{tpu_custom_call.1} parent=1 // pred_region
      %65 = dma.done [#allocation6], 4096
    $region29: #{tpu_custom_call.1} parent=1 // pred_fallthru
      _
    %s66 = sadd.s32 0, 0
    %s67 = smul.u32 2, %s66
    %s68 = sadd.s32 0, 0
    %s69 = smul.u32 2, %s68
    %p70 = scmp.eq.s32.totalorder 0, 0
    // Predicated region
    $region30: #{tpu_custom_call.1} parent=1 // pred_check
      %p71 = pneg %p70
    $region31: #{tpu_custom_call.1} parent=1 // pred_check_branch
      %73 = sbr.rel (%p71) target = $region33
    $region32: #{tpu_custom_call.1} parent=1 // pred_region
      %v74 = vlaneseq
      %vm75 = vcmp.ge.s32.totalorder %v74, 0
      %vm76 = vcmp.lt.s32.totalorder %v74, 512
      %vm77 = vmand %vm75, %vm76
      %78 = vst.msk [vmem:[#allocation9] sm:$0xf] %vm77, 0.0
    $region33: #{tpu_custom_call.1} parent=1 // pred_fallthru
      _
    %v79 = vld [vmem:[#allocation2] sm:$0xff]
    %v80 = vld [vmem:[#allocation2 + $0x8] sm:$0xff]
    %v81 = vld [vmem:[#allocation5] sm:$0xff]
    %v82 = vld [vmem:[#allocation5 + $0x8] sm:$0xff]
    %v83 = vld [vmem:[#allocation5 + $0x10] sm:$0xff]
    %v84 = vld [vmem:[#allocation5 + $0x18] sm:$0xff]
    %v85 = vld [vmem:[#allocation5 + $0x20] sm:$0xff]
    %v86 = vld [vmem:[#allocation5 + $0x28] sm:$0xff]
    %v87 = vld [vmem:[#allocation5 + $0x30] sm:$0xff]
    %v88 = vld [vmem:[#allocation5 + $0x38] sm:$0xff]
    %v89 = vld [vmem:[%s2] sm:$0x3]
    %v91 = vlaneseq
    %v92 = vshrl.u32 %v91, 7
    %v93 = vsub.s32 0, %v92
    %v94 = vrot.slane %v89, %v93
    %v95 = vlaneseq
    %v96 = vshrl.u32 %v95, 7
    %v97 = vsub.s32 1, %v96
    %v98 = vrot.slane %v89, %v97
    %vm101 = vcmask 261120
    %v103 = vsel %vm101, %v79, 0
    %v106 = vsel %vm101, %v80, 0
    %108 = vmatprep.subr.mxu0 0.0
    %109 = vmatpush1.msra.mxu0 0.0
    %110 = vmatprep.subr.mxu0 0.0
    %111 = vmatpush1.msra.mxu0 0.0
    %112 = vmatprep.subr.mxu0 0.0
    %113 = vmatpush1.msra.mxu0 0.0
    %114 = vmatprep.subr.mxu0 0.0
    %115 = vmatpush1.msra.mxu0 0.0
    %116 = vmatprep.subr.mxu0 0.0
    %117 = vmatpush1.msra.mxu0 0.0
    %118 = vmatprep.subr.mxu0 0.0
    %119 = vmatpush1.msra.mxu0 0.0
    %120 = vmatprep.subr.mxu0 0.0
    %121 = vmatpush1.msra.mxu0 0.0
    %122 = vmatprep.subr.mxu0 0.0
    %123 = vmatpush1.msra.mxu0 0.0
    %124 = vmatprep.subr.mxu0 0.0
    %125 = vmatpush1.msra.mxu0 0.0
    %126 = vmatprep.subr.mxu0 0.0
    %127 = vmatpush1.msra.mxu0 0.0
    %128 = vmatprep.subr.mxu0 0.0
    %129 = vmatpush1.msra.mxu0 0.0
    %130 = vmatprep.subr.mxu0 0.0
    %131 = vmatpush1.msra.mxu0 0.0
    %132 = vmatprep.subr.mxu0 %v88
    %133 = vmatpush1.msra.mxu0 %v87
    %134 = vmatprep.subr.mxu0 %v86
    %135 = vmatpush1.msra.mxu0 %v85
    %136 = vmatprep.subr.mxu0 %v84
    %137 = vmatpush1.msra.mxu0 %v83
    %138 = vmatprep.subr.mxu0 %v82
    %139 = vmatpush1.msra.mxu0 %v81
    %140 = vmatprep.subr.mxu0 0.0
    %141 = vmatpush2.msra.mxu0 0.0
    %142 = vmatprep.subr.mxu0 0.0
    %143 = vmatpush2.msra.mxu0 0.0
    %144 = vmatprep.subr.mxu0 0.0
    %145 = vmatpush2.msra.mxu0 0.0
    %146 = vmatprep.subr.mxu0 0.0
    %147 = vmatpush2.msra.mxu0 0.0
    %148 = vmatprep.subr.mxu0 0.0
    %149 = vmatpush2.msra.mxu0 0.0
    %150 = vmatprep.subr.mxu0 0.0
    %151 = vmatpush2.msra.mxu0 0.0
    %152 = vmatprep.subr.mxu0 0.0
    %153 = vmatpush2.msra.mxu0 0.0
    %154 = vmatprep.subr.mxu0 0.0
    %155 = vmatpush2.msra.mxu0 0.0
    %156 = vmatprep.subr.mxu0 0.0
    %157 = vmatpush2.msra.mxu0 0.0
    %158 = vmatprep.subr.mxu0 0.0
    %159 = vmatpush2.msra.mxu0 0.0
    %160 = vmatprep.subr.mxu0 0.0
    %161 = vmatpush2.msra.mxu0 0.0
    %162 = vmatprep.subr.mxu0 0.0
    %163 = vmatpush2.msra.mxu0 0.0
    %164 = vmatprep.subr.mxu0 0.0
    %165 = vmatpush2.msra.mxu0 0.0
    %166 = vmatprep.subr.mxu0 0.0
    %167 = vmatpush2.msra.mxu0 0.0
    %168 = vmatprep.subr.mxu0 0.0
    %169 = vmatpush2.msra.mxu0 0.0
    %170 = vmatprep.subr.mxu0 0.0
    %171 = vmatpush2.msra.mxu0 0.0
    %172 = vmatprep.mubr.f32.mxu0 0.0
    %173 = vmatmul.mubr.f32.gmra.mxu0 %v103
    %v174 = vpop.f32.mrf.mxu0
    %v175 = vadd.f32 %v94, %v174
    %v176 = vpop.f32.mrf.mxu0
    %v177 = vadd.f32 %v98, %v176
    %178 = vmatprep.mubr.f32.mxu0 0.0
    %179 = vmatmul.mubr.f32.gmra.mxu0 %v106
    %v180 = vpop.f32.mrf.mxu0
    %v181 = vadd.f32 %v94, %v180
    %v182 = vpop.f32.mrf.mxu0
    %v183 = vadd.f32 %v98, %v182
    %184 = vdwg.mxu0
    %s185 = sadd.s32 0, 0
    %s186 = smul.u32 %s185, 16
    %v187 = vlaneseq
    %v188 = vand.u32 %v187, 127
    %v189 = vstv %s186
    %v190 = vadd.s32 %v189, %v188
    %vm191 = vcmp.lt.s32.totalorder %v190, 16
    %v192 = vsel %vm191, 1, 0
    %v193 = vcvt.s32.f32 %v192
    %194 = vmax.xlane.f32.xlu0 %v175
    %v195 = vpop.xlane.xlu0 %194
    %196 = vmax.xlane.f32.xlu0 %v181
    %v197 = vpop.xlane.xlu0 %196
    %vm198 = vcmp.eq.f32.partialorder %v175, %v195
    %vm199 = vcmp.eq.f32.partialorder %v181, %v197
    %v200 = vsel %vm198, %v188, 128
    %v201 = vsel %vm199, %v188, 128
    %v202 = vand.u32 %v200, 65535
    %v203 = vshra.s32 %v200, 16
    %v204 = vcvt.s32.f32 %v202
    %v205 = vcvt.s32.f32 %v203
    %206 = vmin.xlane.f32.xlu0 %v205
    %v207 = vpop.xlane.xlu0 %206
    %vm208 = vcmp.eq.f32.partialorder %v205, %v207
    %v209 = vsel %vm208, %v204, inf
    %210 = vmin.xlane.f32.xlu0 %v209
    %v211 = vpop.xlane.xlu0 %210
    %v212 = vcvt.f32.s32 %v211
    %v213 = vcvt.f32.s32 %v207
    %v214 = vshll.u32 %v213, 16
    %v215 = vadd.s32 %v214, %v212
    %v216 = vand.u32 %v201, 65535
    %v217 = vshra.s32 %v201, 16
    %v218 = vcvt.s32.f32 %v216
    %v219 = vcvt.s32.f32 %v217
    %220 = vmin.xlane.f32.xlu0 %v219
    %v221 = vpop.xlane.xlu0 %220
    %vm222 = vcmp.eq.f32.partialorder %v219, %v221
    %v223 = vsel %vm222, %v218, inf
    %224 = vmin.xlane.f32.xlu0 %v223
    %v225 = vpop.xlane.xlu0 %224
    %v226 = vcvt.f32.s32 %v225
    %v227 = vcvt.f32.s32 %v221
    %v228 = vshll.u32 %v227, 16
    %v229 = vadd.s32 %v228, %v226
    %vm230 = vcmp.eq.s32.totalorder %v188, %v215
    %vm231 = vcmp.eq.s32.totalorder %v188, %v229
    %v232 = vsel %vm230, 1, 0
    %v233 = vsel %vm231, 1, 0
    %v234 = vcvt.s32.f32 %v232
    %v235 = vcvt.s32.f32 %v233
    %v236 = vsub.f32 %v175, %v195
    %v237 = vsub.f32 %v181, %v197
    %v238 = vmul.f32 %v236, 1.442695
    %v239 = vpow.pop %v238
    %v240 = vmul.f32 %v237, 1.442695
    %v241 = vpow.pop %v240
    %242 = vadd.xlane.f32.xlu0 %v239
    %v243 = vpop.xlane.xlu0 %242
    %244 = vadd.xlane.f32.xlu0 %v241
    %v245 = vpop.xlane.xlu0 %244
    %v246 = vrcp.pop %v243
    %v247 = vrcp.pop %v245
    %v248 = vmul.f32 %v239, %v246
    %v249 = vmul.f32 %v241, %v247
    %250 = vmax.xlane.f32.xlu0 %v177
    %v251 = vpop.xlane.xlu0 %250
    %252 = vmax.xlane.f32.xlu0 %v183
    %v253 = vpop.xlane.xlu0 %252
    %vm254 = vcmp.eq.f32.partialorder %v177, %v251
    %vm255 = vcmp.eq.f32.partialorder %v183, %v253
    %v256 = vsel %vm254, %v188, 128
    %v257 = vsel %vm255, %v188, 128
    %v258 = vand.u32 %v256, 65535
    %v259 = vshra.s32 %v256, 16
    %v260 = vcvt.s32.f32 %v258
    %v261 = vcvt.s32.f32 %v259
    %262 = vmin.xlane.f32.xlu0 %v261
    %v263 = vpop.xlane.xlu0 %262
    %vm264 = vcmp.eq.f32.partialorder %v261, %v263
    %v265 = vsel %vm264, %v260, inf
    %266 = vmin.xlane.f32.xlu0 %v265
    %v267 = vpop.xlane.xlu0 %266
    %v268 = vcvt.f32.s32 %v267
    %v269 = vcvt.f32.s32 %v263
    %v270 = vshll.u32 %v269, 16
    %v271 = vadd.s32 %v270, %v268
    %v272 = vand.u32 %v257, 65535
    %v273 = vshra.s32 %v257, 16
    %v274 = vcvt.s32.f32 %v272
    %v275 = vcvt.s32.f32 %v273
    %276 = vmin.xlane.f32.xlu0 %v275
    %v277 = vpop.xlane.xlu0 %276
    %vm278 = vcmp.eq.f32.partialorder %v275, %v277
    %v279 = vsel %vm278, %v274, inf
    %280 = vmin.xlane.f32.xlu0 %v279
    %v281 = vpop.xlane.xlu0 %280
    %v282 = vcvt.f32.s32 %v281
    %v283 = vcvt.f32.s32 %v277
    %v284 = vshll.u32 %v283, 16
    %v285 = vadd.s32 %v284, %v282
    %vm286 = vcmp.eq.s32.totalorder %v188, %v271
    %vm287 = vcmp.eq.s32.totalorder %v188, %v285
    %v288 = vsel %vm286, 1, 0
    %v289 = vsel %vm287, 1, 0
    %v290 = vcvt.s32.f32 %v288
    %v291 = vcvt.s32.f32 %v289
    %v292 = vsub.f32 %v177, %v251
    %v293 = vsub.f32 %v183, %v253
    %v294 = vmul.f32 %v292, 1.442695
    %v295 = vpow.pop %v294
    %v296 = vmul.f32 %v293, 1.442695
    %v297 = vpow.pop %v296
    %298 = vadd.xlane.f32.xlu0 %v295
    %v299 = vpop.xlane.xlu0 %298
    %300 = vadd.xlane.f32.xlu0 %v297
    %v301 = vpop.xlane.xlu0 %300
    %v302 = vrcp.pop %v299
    %v303 = vrcp.pop %v301
    %v304 = vmul.f32 %v295, %v302
    %v305 = vmul.f32 %v297, %v303
    %v306 = vld [vmem:[#allocation7] sm:$0xff]
    %v307 = vld [vmem:[#allocation7 + $0x8] sm:$0xff]
    %v308 = vld [vmem:[#allocation7 + $0x10] sm:$0xff]
    %v309 = vld [vmem:[#allocation7 + $0x18] sm:$0xff]
    %v310 = vld [vmem:[#allocation7 + $0x20] sm:$0xff]
    %v311 = vld [vmem:[#allocation7 + $0x28] sm:$0xff]
    %v312 = vld [vmem:[#allocation7 + $0x30] sm:$0xff]
    %v313 = vld [vmem:[#allocation7 + $0x38] sm:$0xff]
    %v314 = vld [vmem:[#allocation7 + $0x40] sm:$0xff]
    %v315 = vld [vmem:[#allocation7 + $0x48] sm:$0xff]
    %v316 = vld [vmem:[#allocation7 + $0x50] sm:$0xff]
    %v317 = vld [vmem:[#allocation7 + $0x58] sm:$0xff]
    %v318 = vld [vmem:[#allocation7 + $0x60] sm:$0xff]
    %v319 = vld [vmem:[#allocation7 + $0x68] sm:$0xff]
    %v320 = vld [vmem:[#allocation7 + $0x70] sm:$0xff]
    %v321 = vld [vmem:[#allocation7 + $0x78] sm:$0xff]
    %v322 = vld [vmem:[#allocation7 + $0x80] sm:$0xff]
    %v323 = vld [vmem:[#allocation7 + $0x88] sm:$0xff]
    %v324 = vld [vmem:[#allocation7 + $0x90] sm:$0xff]
    %v325 = vld [vmem:[#allocation7 + $0x98] sm:$0xff]
    %v326 = vld [vmem:[#allocation7 + $0xa0] sm:$0xff]
    %v327 = vld [vmem:[#allocation7 + $0xa8] sm:$0xff]
    %v328 = vld [vmem:[#allocation7 + $0xb0] sm:$0xff]
    %v329 = vld [vmem:[#allocation7 + $0xb8] sm:$0xff]
    %v330 = vld [vmem:[#allocation7 + $0xc0] sm:$0xff]
    %v331 = vld [vmem:[#allocation7 + $0xc8] sm:$0xff]
    %v332 = vld [vmem:[#allocation7 + $0xd0] sm:$0xff]
    %v333 = vld [vmem:[#allocation7 + $0xd8] sm:$0xff]
    %v334 = vld [vmem:[#allocation7 + $0xe0] sm:$0xff]
    %v335 = vld [vmem:[#allocation7 + $0xe8] sm:$0xff]
    %v336 = vld [vmem:[#allocation7 + $0xf0] sm:$0xff]
    %v337 = vld [vmem:[#allocation7 + $0xf8] sm:$0xff]
    %338 = vmatprep.subr.mxu0 0.0
    %339 = vmatpush1.msra.mxu0 %v321
    %340 = vmatprep.subr.mxu0 0.0
    %341 = vmatpush1.msra.mxu0 %v320
    %342 = vmatprep.subr.mxu0 0.0
    %343 = vmatpush1.msra.mxu0 %v319
    %344 = vmatprep.subr.mxu0 0.0
    %345 = vmatpush1.msra.mxu0 %v318
    %346 = vmatprep.subr.mxu0 0.0
    %347 = vmatpush1.msra.mxu0 %v317
    %348 = vmatprep.subr.mxu0 0.0
    %349 = vmatpush1.msra.mxu0 %v316
    %350 = vmatprep.subr.mxu0 0.0
    %351 = vmatpush1.msra.mxu0 %v315
    %352 = vmatprep.subr.mxu0 0.0
    %353 = vmatpush1.msra.mxu0 %v314
    %354 = vmatprep.subr.mxu0 0.0
    %355 = vmatpush1.msra.mxu0 %v313
    %356 = vmatprep.subr.mxu0 0.0
    %357 = vmatpush1.msra.mxu0 %v312
    %358 = vmatprep.subr.mxu0 0.0
    %359 = vmatpush1.msra.mxu0 %v311
    %360 = vmatprep.subr.mxu0 0.0
    %361 = vmatpush1.msra.mxu0 %v310
    %362 = vmatprep.subr.mxu0 0.0
    %363 = vmatpush1.msra.mxu0 %v309
    %364 = vmatprep.subr.mxu0 0.0
    %365 = vmatpush1.msra.mxu0 %v308
    %366 = vmatprep.subr.mxu0 0.0
    %367 = vmatpush1.msra.mxu0 %v307
    %368 = vmatprep.subr.mxu0 0.0
    %369 = vmatpush1.msra.mxu0 %v306
    %370 = vmatprep.subr.mxu0 0.0
    %371 = vmatpush2.msra.mxu0 %v337
    %372 = vmatprep.subr.mxu0 0.0
    %373 = vmatpush2.msra.mxu0 %v336
    %374 = vmatprep.subr.mxu0 0.0
    %375 = vmatpush2.msra.mxu0 %v335
    %376 = vmatprep.subr.mxu0 0.0
    %377 = vmatpush2.msra.mxu0 %v334
    %378 = vmatprep.subr.mxu0 0.0
    %379 = vmatpush2.msra.mxu0 %v333
    %380 = vmatprep.subr.mxu0 0.0
    %381 = vmatpush2.msra.mxu0 %v332
    %382 = vmatprep.subr.mxu0 0.0
    %383 = vmatpush2.msra.mxu0 %v331
    %384 = vmatprep.subr.mxu0 0.0
    %385 = vmatpush2.msra.mxu0 %v330
    %386 = vmatprep.subr.mxu0 0.0
    %387 = vmatpush2.msra.mxu0 %v329
    %388 = vmatprep.subr.mxu0 0.0
    %389 = vmatpush2.msra.mxu0 %v328
    %390 = vmatprep.subr.mxu0 0.0
    %391 = vmatpush2.msra.mxu0 %v327
    %392 = vmatprep.subr.mxu0 0.0
    %393 = vmatpush2.msra.mxu0 %v326
    %394 = vmatprep.subr.mxu0 0.0
    %395 = vmatpush2.msra.mxu0 %v325
    %396 = vmatprep.subr.mxu0 0.0
    %397 = vmatpush2.msra.mxu0 %v324
    %398 = vmatprep.subr.mxu0 0.0
    %399 = vmatpush2.msra.mxu0 %v323
    %400 = vmatprep.subr.mxu0 0.0
    %401 = vmatpush2.msra.mxu0 %v322
    %402 = vmatprep.mubr.f32.mxu0 %v290
    %403 = vmatmul.mubr.f32.gmra.mxu0 %v234
    %v404 = vpop.f32.mrf.mxu0
    %v405 = vadd.f32 0.0, %v404
    %v406 = vpop.f32.mrf.mxu0
    %407 = vmatprep.mubr.f32.mxu0 %v291
    %408 = vmatmul.mubr.f32.gmra.mxu0 %v235
    %v409 = vpop.f32.mrf.mxu0
    %v410 = vadd.f32 0.0, %v409
    %v411 = vpop.f32.mrf.mxu0
    %412 = vdwg.mxu0
    %413 = vst [vmem:[#allocation8] sm:$0xff] %v405
    %414 = vst [vmem:[#allocation8 + $0x8] sm:$0xff] %v410
    %v415 = vld [vmem:[#allocation9] sm:$0xf]
    %vm416 = vcmask 130048
    %v418 = vsel %vm416, %v193, 0
    %420 = vmatprep.subr.mxu0 0.0
    %421 = vmatpush1.msra.mxu0 0.0
    %422 = vmatprep.subr.mxu0 0.0
    %423 = vmatpush1.msra.mxu0 0.0
    %424 = vmatprep.subr.mxu0 0.0
    %425 = vmatpush1.msra.mxu0 0.0
    %426 = vmatprep.subr.mxu0 0.0
    %427 = vmatpush1.msra.mxu0 0.0
    %428 = vmatprep.subr.mxu0 0.0
    %429 = vmatpush1.msra.mxu0 0.0
    %430 = vmatprep.subr.mxu0 0.0
    %431 = vmatpush1.msra.mxu0 0.0
    %432 = vmatprep.subr.mxu0 0.0
    %433 = vmatpush1.msra.mxu0 0.0
    %434 = vmatprep.subr.mxu0 0.0
    %435 = vmatpush1.msra.mxu0 0.0
    %436 = vmatprep.subr.mxu0 0.0
    %437 = vmatpush1.msra.mxu0 0.0
    %438 = vmatprep.subr.mxu0 0.0
    %439 = vmatpush1.msra.mxu0 0.0
    %440 = vmatprep.subr.mxu0 0.0
    %441 = vmatpush1.msra.mxu0 0.0
    %442 = vmatprep.subr.mxu0 0.0
    %443 = vmatpush1.msra.mxu0 0.0
    %444 = vmatprep.subr.mxu0 0.0
    %445 = vmatpush1.msra.mxu0 0.0
    %446 = vmatprep.subr.mxu0 0.0
    %447 = vmatpush1.msra.mxu0 0.0
    %448 = vmatprep.subr.mxu0 %v291
    %449 = vmatpush1.msra.mxu0 %v235
    %450 = vmatprep.subr.mxu0 %v290
    %451 = vmatpush1.msra.mxu0 %v234
    %452 = vmatprep.subr.mxu0 0.0
    %453 = vmatpush2.msra.mxu0 0.0
    %454 = vmatprep.subr.mxu0 0.0
    %455 = vmatpush2.msra.mxu0 0.0
    %456 = vmatprep.subr.mxu0 0.0
    %457 = vmatpush2.msra.mxu0 0.0
    %458 = vmatprep.subr.mxu0 0.0
    %459 = vmatpush2.msra.mxu0 0.0
    %460 = vmatprep.subr.mxu0 0.0
    %461 = vmatpush2.msra.mxu0 0.0
    %462 = vmatprep.subr.mxu0 0.0
    %463 = vmatpush2.msra.mxu0 0.0
    %464 = vmatprep.subr.mxu0 0.0
    %465 = vmatpush2.msra.mxu0 0.0
    %466 = vmatprep.subr.mxu0 0.0
    %467 = vmatpush2.msra.mxu0 0.0
    %468 = vmatprep.subr.mxu0 0.0
    %469 = vmatpush2.msra.mxu0 0.0
    %470 = vmatprep.subr.mxu0 0.0
    %471 = vmatpush2.msra.mxu0 0.0
    %472 = vmatprep.subr.mxu0 0.0
    %473 = vmatpush2.msra.mxu0 0.0
    %474 = vmatprep.subr.mxu0 0.0
    %475 = vmatpush2.msra.mxu0 0.0
    %476 = vmatprep.subr.mxu0 0.0
    %477 = vmatpush2.msra.mxu0 0.0
    %478 = vmatprep.subr.mxu0 0.0
    %479 = vmatpush2.msra.mxu0 0.0
    %480 = vmatprep.subr.mxu0 0.0
    %481 = vmatpush2.msra.mxu0 0.0
    %482 = vmatprep.subr.mxu0 0.0
    %483 = vmatpush2.msra.mxu0 0.0
    %484 = vmatprep.mubr.f32.mxu0 0.0
    %485 = vmatmul.mubr.f32.gmra.mxu0 %v418
    %v486 = vpop.f32.mrf.mxu0
    %v487 = vadd.f32 0.0, %v486
    %v488 = vpop.f32.mrf.mxu0
    %v489 = vadd.f32 0.0, %v488
    %490 = vdwg.mxu0
    %491 = vmatprep.subr.mxu0 0.0
    %492 = vmatpush1.msra.mxu0 0.0
    %493 = vmatprep.subr.mxu0 0.0
    %494 = vmatpush1.msra.mxu0 0.0
    %495 = vmatprep.subr.mxu0 0.0
    %496 = vmatpush1.msra.mxu0 0.0
    %497 = vmatprep.subr.mxu0 0.0
    %498 = vmatpush1.msra.mxu0 0.0
    %499 = vmatprep.subr.mxu0 0.0
    %500 = vmatpush1.msra.mxu0 0.0
    %501 = vmatprep.subr.mxu0 0.0
    %502 = vmatpush1.msra.mxu0 0.0
    %503 = vmatprep.subr.mxu0 0.0
    %504 = vmatpush1.msra.mxu0 0.0
    %505 = vmatprep.subr.mxu0 0.0
    %506 = vmatpush1.msra.mxu0 0.0
    %507 = vmatprep.subr.mxu0 0.0
    %508 = vmatpush1.msra.mxu0 0.0
    %509 = vmatprep.subr.mxu0 0.0
    %510 = vmatpush1.msra.mxu0 0.0
    %511 = vmatprep.subr.mxu0 0.0
    %512 = vmatpush1.msra.mxu0 0.0
    %513 = vmatprep.subr.mxu0 0.0
    %514 = vmatpush1.msra.mxu0 0.0
    %515 = vmatprep.subr.mxu0 0.0
    %516 = vmatpush1.msra.mxu0 0.0
    %517 = vmatprep.subr.mxu0 0.0
    %518 = vmatpush1.msra.mxu0 0.0
    %519 = vmatprep.subr.mxu0 %v305
    %520 = vmatpush1.msra.mxu0 %v249
    %521 = vmatprep.subr.mxu0 %v304
    %522 = vmatpush1.msra.mxu0 %v248
    %523 = vmatprep.subr.mxu0 0.0
    %524 = vmatpush2.msra.mxu0 0.0
    %525 = vmatprep.subr.mxu0 0.0
    %526 = vmatpush2.msra.mxu0 0.0
    %527 = vmatprep.subr.mxu0 0.0
    %528 = vmatpush2.msra.mxu0 0.0
    %529 = vmatprep.subr.mxu0 0.0
    %530 = vmatpush2.msra.mxu0 0.0
    %531 = vmatprep.subr.mxu0 0.0
    %532 = vmatpush2.msra.mxu0 0.0
    %533 = vmatprep.subr.mxu0 0.0
    %534 = vmatpush2.msra.mxu0 0.0
    %535 = vmatprep.subr.mxu0 0.0
    %536 = vmatpush2.msra.mxu0 0.0
    %537 = vmatprep.subr.mxu0 0.0
    %538 = vmatpush2.msra.mxu0 0.0
    %539 = vmatprep.subr.mxu0 0.0
    %540 = vmatpush2.msra.mxu0 0.0
    %541 = vmatprep.subr.mxu0 0.0
    %542 = vmatpush2.msra.mxu0 0.0
    %543 = vmatprep.subr.mxu0 0.0
    %544 = vmatpush2.msra.mxu0 0.0
    %545 = vmatprep.subr.mxu0 0.0
    %546 = vmatpush2.msra.mxu0 0.0
    %547 = vmatprep.subr.mxu0 0.0
    %548 = vmatpush2.msra.mxu0 0.0
    %549 = vmatprep.subr.mxu0 0.0
    %550 = vmatpush2.msra.mxu0 0.0
    %551 = vmatprep.subr.mxu0 0.0
    %552 = vmatpush2.msra.mxu0 0.0
    %553 = vmatprep.subr.mxu0 0.0
    %554 = vmatpush2.msra.mxu0 0.0
    %555 = vmatprep.mubr.f32.mxu0 0.0
    %556 = vmatmul.mubr.f32.gmra.mxu0 %v418
    %v557 = vpop.f32.mrf.mxu0
    %v558 = vadd.f32 0.0, %v557
    %v559 = vpop.f32.mrf.mxu0
    %v560 = vadd.f32 0.0, %v559
    %561 = vdwg.mxu0
    %v566 = vcombine.low %v487, %v489
    %v567 = vcombine.low %v558, %v560
    %v569 = vunpack.c.l.s4 1966171168
    %v570 = vunpack.c.0.s8 %v569
    %v571 = vlaneseq
    %v572 = vshrl.u32 %v571, 7
    %v573 = vsub.s32 %v570, %v572
    %v574 = vrot.slane %v566, %v573
    %v576 = vunpack.c.l.s4 1966171168
    %v577 = vunpack.c.0.s8 %v576
    %v578 = vlaneseq
    %v579 = vshrl.u32 %v578, 7
    %v580 = vsub.s32 %v577, %v579
    %v581 = vrot.slane %v567, %v580
    %v582 = vcombine.low %v574, %v581
    %v584 = vunpack.c.l.s4 1966171168
    %v585 = vunpack.c.0.s8 %v584
    %v586 = vlaneseq
    %v587 = vshrl.u32 %v586, 7
    %v588 = vsub.s32 %v585, %v587
    %v589 = vrot.slane %v582, %v588
    %v591 = vadd.f32 %v415, %v589
    %v592 = vlaneseq
    %vm593 = vcmp.ge.s32.totalorder %v592, 0
    %vm594 = vcmp.lt.s32.totalorder %v592, 512
    %vm595 = vmand %vm593, %vm594
    %596 = vst.msk [vmem:[#allocation9] sm:$0xf] %vm595, %v591
    // Predicated region
    $region34: #{tpu_custom_call.1} parent=1 // pred_check
      _
    $region35: #{tpu_custom_call.1} parent=1 // pred_check_branch
      %598 = sbr.rel (0) target = $region37
    $region36: #{tpu_custom_call.1} parent=1 // pred_region
      %s599 = sadd.s32 0, 0
      %s600 = smul.u32 2, %s599
      %s602 = ssub.s32 256, 256
      %603 = vsyncadd [#allocation4], %s602
      %s604 = smul.addr %s600, 128
      %s605 = scalar_lea.hbm %s4, %s604
      %s606 = sshll.u32 [#allocation8], 4
      %s607 = int_to_ptr.vmem [resolvable:$true] %s606
      %612 = dma.vmem_to_hbm [thread:$0]  %s607, 256, %s605, [#allocation4], 128, 128, 8
    $region37: #{tpu_custom_call.1} parent=1 // pred_fallthru
      _
    // Predicated region
    $region38: #{tpu_custom_call.1} parent=1 // pred_check
      _
    $region39: #{tpu_custom_call.1} parent=1 // pred_check_branch
      %614 = sbr.rel (0) target = $region41
    $region40: #{tpu_custom_call.1} parent=1 // pred_region
      %s616 = ssub.s32 64, 64
      %617 = vsyncadd [#allocation10], %s616
      %s619 = sshll.u32 [#allocation9], 4
      %s620 = int_to_ptr.vmem [resolvable:$true] %s619
      %622 = dma.vmem_to_hbm [thread:$0]  %s620, 64, %s5, [#allocation10]
    $region41: #{tpu_custom_call.1} parent=1 // pred_fallthru
      _
    // Predicated region
    $region42: #{tpu_custom_call.1} parent=1 // pred_check
      _
    $region43: #{tpu_custom_call.1} parent=1 // pred_check_branch
      %624 = sbr.rel (0) target = $region45
    $region44: #{tpu_custom_call.1} parent=1 // pred_region
      %625 = dma.done [#allocation4], 256
    $region45: #{tpu_custom_call.1} parent=1 // pred_fallthru
      _
    // Predicated region
    $region46: #{tpu_custom_call.1} parent=1 // pred_check
      _
    $region47: #{tpu_custom_call.1} parent=1 // pred_check_branch
      %627 = sbr.rel (0) target = $region49
    $region48: #{tpu_custom_call.1} parent=1 // pred_region
      %628 = dma.done [#allocation10], 64
    $region49: #{tpu_custom_call.1} parent=1 // pred_fallthru
      _
    %629 = vsyncpa [#allocation3], 1
    %630 = vsyncpa [#allocation6], 1
    %631 = vsyncpa [#allocation4], 1
    %632 = vsyncpa [#allocation10], 1

</llo_original>
